<compile_context>
chip_gen: v7x
topology: tpu7x:2x2x1
jax: 0.10.0
libtpu: 0.0.40
codegen_flags: <defaults>
</compile_context>

<pallas_src>
import functools

import jax
import jax.numpy as jnp
from jax.experimental import pallas as pl
from jax.experimental.pallas import tpu as pltpu

_LANES = 128
_SUBLANES = 8
_MAX_BLOCK_ROWS = 4096      # 4096*128*4B = 2 MiB per f32 input per buffer
_PAD_LOGIT = -10000.0       # any value <= ~-104 makes the padded BCE term exactly 0


def _round_up(x, m):
    return ((x + m - 1) // m) * m


def _row_multiple(dtype):
    # Second-to-minor block dim must be a multiple of the dtype packing factor
    # (8 for 4-byte, 16 for 2-byte, 32 for 1-byte elements).
    return max(_SUBLANES, 32 // jnp.dtype(dtype).itemsize)


def _focal_bce_partial_kernel(x_ref, t_ref, o_ref, *,
                              block_rows, inner_blocks, num_blocks, guard_tail):
    i = pl.program_id(1)

    @pl.when(i == 0)
    def _():
        o_ref[...] = jnp.zeros_like(o_ref)

    x = x_ref[...].astype(jnp.float32)
    t = t_ref[...].astype(jnp.float32)

    # Logits-domain BCE with F.binary_cross_entropy's -100 log-clamps folded in:
    #   -log(sigmoid(x))     = softplus(-x) = max(-x, 0) + log1p(exp(-|x|))
    #   -log(1 - sigmoid(x)) = softplus( x) = max( x, 0) + log1p(exp(-|x|))
    s = jnp.log1p(jnp.exp(-jnp.abs(x)))                       # shared EUP pair
    nlog_p = jnp.minimum(jnp.maximum(-x, 0.0) + s, 100.0)     # min(-log p,     100)
    nlog_1mp = jnp.minimum(jnp.maximum(x, 0.0) + s, 100.0)    # min(-log(1-p),  100)
    bce = nlog_1mp + t * (nlog_p - nlog_1mp)   # == t*nlog_p + (1-t)*nlog_1mp

    # Fold (block_rows, 128) -> (8, 128) with pure VPU adds; the single
    # cross-lane reduction happens outside on the tiny (ncores*8, 128) partials.
    partial = jnp.sum(
        bce.reshape(block_rows // _SUBLANES, _SUBLANES, _LANES), axis=0)

    if guard_tail:
        # Odd block count split across 2 cores: the clamped index_map re-fetches
        # the last real block on the overhanging step; skip accumulating it.
        @pl.when(pl.program_id(0) * inner_blocks + i < num_blocks)
        def _():
            o_ref[...] += partial
    else:
        o_ref[...] += partial


def focal_loss(inputs, targets, alpha=0.25, gamma=2):
    """Pallas TPU implementation of FocalLoss.forward. Returns an f32 scalar."""
    n_valid = inputs.size
    x = jnp.ravel(inputs)
    t = jnp.ravel(targets)

    # Stream native dtypes (bf16/f16/f32 logits, float/int targets); only fall
    # back to a wrapper cast for dtypes the kernel math can't consume directly.
    if not jnp.issubdtype(x.dtype, jnp.floating):
        x = x.astype(jnp.float32)
    if t.dtype == jnp.bool_:
        t = t.astype(jnp.float32)

    row_mult = max(_row_multiple(x.dtype), _row_multiple(t.dtype))
    rows = pl.cdiv(n_valid, _LANES)
    block_rows = min(_MAX_BLOCK_ROWS, _round_up(rows, row_mult))
    num_blocks = pl.cdiv(rows, block_rows)

    padded = num_blocks * block_rows * _LANES
    if padded != n_valid:
        # Pad values make the padded BCE contribution exactly 0 -> no mask needed.
        x = jnp.pad(x, (0, padded - n_valid), constant_values=_PAD_LOGIT)
        t = jnp.pad(t, (0, padded - n_valid), constant_values=0)

    x2 = x.reshape(num_blocks * block_rows, _LANES)
    t2 = t.reshape(num_blocks * block_rows, _LANES)

    # v7x megacore: shard the streaming reduction across both TensorCores.
    ncores = 2 if num_blocks >= 2 else 1
    inner = pl.cdiv(num_blocks, ncores)
    guard_tail = (ncores * inner != num_blocks)

    if guard_tail:
        def blk_map(ci, i):
            return (jnp.minimum(ci * inner + i, num_blocks - 1), 0)
    else:
        def blk_map(ci, i):
            return (ci * inner + i, 0)

    kernel = functools.partial(
        _focal_bce_partial_kernel,
        block_rows=block_rows, inner_blocks=inner,
        num_blocks=num_blocks, guard_tail=guard_tail)

    partials = pl.pallas_call(
        kernel,
        out_shape=jax.ShapeDtypeStruct((ncores * _SUBLANES, _LANES), jnp.float32),
        grid_spec=pltpu.PrefetchScalarGridSpec(
            num_scalar_prefetch=0,
            grid=(ncores, inner),
            in_specs=[
                pl.BlockSpec((block_rows, _LANES), blk_map),
                pl.BlockSpec((block_rows, _LANES), blk_map),
            ],
            out_specs=pl.BlockSpec((_SUBLANES, _LANES), lambda ci, i: (ci, 0)),
        ),
        compiler_params=pltpu.CompilerParams(
            dimension_semantics=("parallel", "arbitrary"),
            vmem_limit_bytes=32 * 1024 * 1024),
    )(x2, t2)

    # Tiny epilogue in plain JAX: cross-lane sum + focal transform (scalar work).
    mean_bce = jnp.sum(partials) * (1.0 / float(n_valid))
    focal_base = jnp.maximum(1.0 - jnp.exp(-mean_bce), 0.0)
    return alpha * focal_base ** gamma * mean_bce


def _focal_loss_ref(inputs, targets, alpha=0.25, gamma=2):
    # Reference in the original (sigmoid + log) formulation.
    p = jax.nn.sigmoid(inputs.astype(jnp.float32))
    t = targets.astype(jnp.float32)
    log_p = jnp.maximum(jnp.log(p), -100.0)
    log_1mp = jnp.maximum(jnp.log(1.0 - p), -100.0)
    bce = jnp.mean(-(t * log_p + (1.0 - t) * log_1mp))
    return alpha * (1.0 - jnp.exp(-bce)) ** gamma * bce


if __name__ == "__main__":
    key = jax.random.PRNGKey(0)
    k1, k2 = jax.random.split(key)

    # Small shapes consistent with dense-prediction use (NCHW logits).
    shape = (2, 4, 16, 16)
    inputs = jax.random.normal(k1, shape, dtype=jnp.float32)
    targets = (jax.random.uniform(k2, shape) > 0.5).astype(jnp.float32)

    loss = focal_loss(inputs, targets, alpha=0.25, gamma=2)
    loss = jax.block_until_ready(loss)

    ref = _focal_loss_ref(inputs, targets, alpha=0.25, gamma=2)
    assert jnp.allclose(loss, ref, rtol=1e-5, atol=1e-6), (loss, ref)

    print("KERNEL_OK")
</pallas_src>

<mosaic_0001>
module attributes {stable_mosaic.version = 11 : i64} {
  func.func @_focal_bce_partial_kernel(%arg0: i32, %arg1: i32, %arg2: memref<16x128xf32, #tpu.memory_space<vmem>>, %arg3: memref<16x128xf32, #tpu.memory_space<vmem>>, %arg4: memref<8x128xf32, #tpu.memory_space<vmem>>) attributes {dimension_semantics = [#tpu.dimension_semantics<parallel>, #tpu.dimension_semantics<arbitrary>], iteration_bounds = array<i64: 1, 1>, scalar_prefetch = 0 : i64, scratch_operands = 0 : i64, tpu.core_type = #tpu.core_type<tc>, window_params = [{transform_indices = @transform_0, window_bounds = array<i64: 16, 128>}, {transform_indices = @transform_1, window_bounds = array<i64: 16, 128>}, {transform_indices = @transform_2, window_bounds = array<i64: 8, 128>}]} {
    %c0_i32 = arith.constant 0 : i32
    %0 = arith.cmpi eq, %arg1, %c0_i32 : i32
    %1 = arith.extui %0 : i1 to i32
    %c0_i32_0 = arith.constant 0 : i32
    %2 = arith.cmpi ne, %1, %c0_i32_0 : i32
    scf.if %2 {
      %cst_14 = arith.constant 0.000000e+00 : f32
      %30 = vector.broadcast %cst_14 : f32 to vector<8x128xf32>
      %c0_15 = arith.constant 0 : index
      %c0_16 = arith.constant 0 : index
      %31 = vector.load %arg4[%c0_15, %c0_16] : memref<8x128xf32, #tpu.memory_space<vmem>>, vector<8x128xf32>
      tpu.vector_store %arg4[%c0_15, %c0_16], %30 {strides = array<i32>} : memref<8x128xf32, #tpu.memory_space<vmem>>, vector<8x128xf32>,
    } else {
    }
    %c0 = arith.constant 0 : index
    %c0_1 = arith.constant 0 : index
    %3 = vector.load %arg2[%c0, %c0_1] : memref<16x128xf32, #tpu.memory_space<vmem>>, vector<16x128xf32>
    %c0_2 = arith.constant 0 : index
    %c0_3 = arith.constant 0 : index
    %4 = vector.load %arg3[%c0_2, %c0_3] : memref<16x128xf32, #tpu.memory_space<vmem>>, vector<16x128xf32>
    %5 = math.absf %3 : vector<16x128xf32>
    %cst = arith.constant 0.000000e+00 : f32
    %6 = vector.broadcast %cst : f32 to vector<16x128xf32>
    %7 = arith.subf %6, %5 : vector<16x128xf32>
    %8 = math.exp %7 : vector<16x128xf32>
    %9 = math.log1p %8 : vector<16x128xf32>
    %cst_4 = arith.constant 0.000000e+00 : f32
    %10 = vector.broadcast %cst_4 : f32 to vector<16x128xf32>
    %11 = arith.subf %10, %3 : vector<16x128xf32>
    %cst_5 = arith.constant 0.000000e+00 : f32
    %12 = vector.broadcast %cst_5 : f32 to vector<16x128xf32>
    %13 = arith.maximumf %11, %12 : vector<16x128xf32>
    %14 = arith.addf %13, %9 : vector<16x128xf32>
    %cst_6 = arith.constant 1.000000e+02 : f32
    %15 = vector.broadcast %cst_6 : f32 to vector<16x128xf32>
    %16 = arith.minimumf %14, %15 : vector<16x128xf32>
    %cst_7 = arith.constant 0.000000e+00 : f32
    %17 = vector.broadcast %cst_7 : f32 to vector<16x128xf32>
    %18 = arith.maximumf %3, %17 : vector<16x128xf32>
    %19 = arith.addf %18, %9 : vector<16x128xf32>
    %cst_8 = arith.constant 1.000000e+02 : f32
    %20 = vector.broadcast %cst_8 : f32 to vector<16x128xf32>
    %21 = arith.minimumf %19, %20 : vector<16x128xf32>
    %22 = arith.subf %16, %21 : vector<16x128xf32>
    %23 = arith.mulf %4, %22 : vector<16x128xf32>
    %24 = arith.addf %21, %23 : vector<16x128xf32>
    %25 = vector.shape_cast %24 : vector<16x128xf32> to vector<2x8x128xf32>
    %cst_9 = arith.constant dense<0.000000e+00> : vector<8x128xf32>
    %26 = vector.multi_reduction <add>, %25, %cst_9 [0] : vector<2x8x128xf32> to vector<8x128xf32>
    %c0_10 = arith.constant 0 : index
    %c0_11 = arith.constant 0 : index
    %27 = vector.load %arg4[%c0_10, %c0_11] : memref<8x128xf32, #tpu.memory_space<vmem>>, vector<8x128xf32>
    %28 = arith.addf %27, %26 : vector<8x128xf32>
    %c0_12 = arith.constant 0 : index
    %c0_13 = arith.constant 0 : index
    %29 = vector.load %arg4[%c0_12, %c0_13] : memref<8x128xf32, #tpu.memory_space<vmem>>, vector<8x128xf32>
    tpu.vector_store %arg4[%c0_12, %c0_13], %28 {strides = array<i32>} : memref<8x128xf32, #tpu.memory_space<vmem>>, vector<8x128xf32>,
    return
  }
  func.func @transform_0(%arg0: i32, %arg1: i32) -> (i32, i32) {
    %c1_i32 = arith.constant 1 : i32
    %0 = arith.muli %arg0, %c1_i32 : i32
    %1 = arith.addi %0, %arg1 : i32
    %c0_i32 = arith.constant 0 : i32
    %c0_i32_0 = arith.constant 0 : i32
    return %1, %c0_i32 : i32, i32
  }
  func.func @transform_1(%arg0: i32, %arg1: i32) -> (i32, i32) {
    %c1_i32 = arith.constant 1 : i32
    %0 = arith.muli %arg0, %c1_i32 : i32
    %1 = arith.addi %0, %arg1 : i32
    %c0_i32 = arith.constant 0 : i32
    %c0_i32_0 = arith.constant 0 : i32
    return %1, %c0_i32 : i32, i32
  }
  func.func @transform_2(%arg0: i32, %arg1: i32) -> (i32, i32) {
    %c0_i32 = arith.constant 0 : i32
    %c0_i32_0 = arith.constant 0 : i32
    return %arg0, %c0_i32 : i32, i32
  }
}

</mosaic_0001>

<llo_original>
// kernel: tpu_custom_call.1
$region0: #{tpu_custom_call.1}
  #allocation0 [shape = 'u32[]', space=smem, size = 0x4, offset = 0x4, fixed_abs, tag = 'smem constant byte address 0x4 - core index']
  #allocation1 [shape = 'u32[144,128]{1,0:T(1,128)}', space=vmem, size = 0x12000, scoped, tag = 'internal scratch']
  %s0 = inlined_call_operand.hbm [shape: f32[16,128], index: 0, kind: input, shape index: {}]
  %s1 = inlined_call_operand.hbm [shape: f32[16,128], index: 1, kind: input, shape index: {}]
  %s2 = inlined_call_operand.hbm [shape: f32[8,128], index: 2, kind: output, shape index: {}]
  %s3 = sld [smem:[#allocation0]]
  $region30: #{tpu_custom_call.1} parent=0
    _
  %s5 = ssub.s32 1, %s3
  %s6 = scalar_select 0, %s5, %s3
  $region1: #{tpu_custom_call.1} parent=0
    #allocation2 [shape = 'u8[8192]{0}', space=vmem, size = 0x2000, scoped, tag = 'input window, operand 0, single buffered']
    #allocation3 [shape = 's32[1]{0}', space=sflag, size = 0x4, scoped, tag = 'scoped memory for tpu_custom_call.1']
    #allocation4 [shape = 's32[1]{0}', space=sflag, size = 0x4, scoped, tag = 'scoped memory for tpu_custom_call.1']
    #allocation5 [shape = 'u8[8192]{0}', space=vmem, size = 0x2000, scoped, tag = 'input window, operand 1, single buffered']
    #allocation6 [shape = 's32[1]{0}', space=sflag, size = 0x4, scoped, tag = 'scoped memory for tpu_custom_call.1']
    #allocation7 [shape = 'u8[4096]{0}', space=vmem, size = 0x1000, scoped, tag = 'output window, operand 0, single buffered']
    %7 = vsyncpa [#allocation3], 0
    %8 = vsyncpa [#allocation6], 0
    %9 = vsyncpa [#allocation4], 0
    // Predicated region
    $region2: #{tpu_custom_call.1} parent=1 // pred_check
      _
    $region3: #{tpu_custom_call.1} parent=1 // pred_check_branch
      %11 = sbr.rel (0) target = $region5
    $region4: #{tpu_custom_call.1} parent=1 // pred_region
      %s12 = sadd.s32 0, 0
      %s13 = smul.u32 2, %s12
      %s15 = ssub.s32 256, 256
      %16 = vsyncadd [#allocation3], %s15
      %s17 = smul.addr %s13, 128
      %s18 = scalar_lea.hbm %s0, %s17
      %s19 = sshll.u32 [#allocation2], 4
      %s20 = int_to_ptr.vmem [resolvable:$true] %s19
      %25 = dma.hbm_to_vmem [thread:$0]  %s18, 256, %s20, [#allocation3], 128, 128, 8
    $region5: #{tpu_custom_call.1} parent=1 // pred_fallthru
      _
    // Predicated region
    $region6: #{tpu_custom_call.1} parent=1 // pred_check
      _
    $region7: #{tpu_custom_call.1} parent=1 // pred_check_branch
      %27 = sbr.rel (0) target = $region9
    $region8: #{tpu_custom_call.1} parent=1 // pred_region
      %s28 = sadd.s32 0, 0
      %s29 = smul.u32 2, %s28
      %s31 = ssub.s32 256, 256
      %32 = vsyncadd [#allocation6], %s31
      %s33 = smul.addr %s29, 128
      %s34 = scalar_lea.hbm %s1, %s33
      %s35 = sshll.u32 [#allocation5], 4
      %s36 = int_to_ptr.vmem [resolvable:$true] %s35
      %41 = dma.hbm_to_vmem [thread:$0]  %s34, 256, %s36, [#allocation6], 128, 128, 8
    $region9: #{tpu_custom_call.1} parent=1 // pred_fallthru
      _
    // Predicated region
    $region10: #{tpu_custom_call.1} parent=1 // pred_check
      _
    $region11: #{tpu_custom_call.1} parent=1 // pred_check_branch
      %43 = sbr.rel (0) target = $region13
    $region12: #{tpu_custom_call.1} parent=1 // pred_region
      %44 = dma.done [#allocation3], 256
    $region13: #{tpu_custom_call.1} parent=1 // pred_fallthru
      _
    // Predicated region
    $region14: #{tpu_custom_call.1} parent=1 // pred_check
      _
    $region15: #{tpu_custom_call.1} parent=1 // pred_check_branch
      %46 = sbr.rel (0) target = $region17
    $region16: #{tpu_custom_call.1} parent=1 // pred_region
      %47 = dma.done [#allocation6], 256
    $region17: #{tpu_custom_call.1} parent=1 // pred_fallthru
      _
    %s48 = sadd.s32 0, 0
    %s49 = smul.u32 2, %s48
    %s50 = sadd.s32 0, 0
    %s51 = smul.u32 2, %s50
    %p52 = scmp.eq.s32.totalorder 0, 0
    // Predicated region
    $region18: #{tpu_custom_call.1} parent=1 // pred_check
      %p53 = pneg %p52
    $region19: #{tpu_custom_call.1} parent=1 // pred_check_branch
      %55 = sbr.rel (%p53) target = $region21
    $region20: #{tpu_custom_call.1} parent=1 // pred_region
      %56 = vst [vmem:[#allocation7] sm:$0xff] 0.0
    $region21: #{tpu_custom_call.1} parent=1 // pred_fallthru
      _
    %v57 = vld [vmem:[#allocation2] sm:$0xff]
    %v58 = vld [vmem:[#allocation2 + $0x8] sm:$0xff]
    %v59 = vld [vmem:[#allocation5] sm:$0xff]
    %v60 = vld [vmem:[#allocation5 + $0x8] sm:$0xff]
    %v61 = vand.u32 2147483647, %v57
    %v62 = vand.u32 2147483647, %v58
    %v63 = vsub.f32 0.0, %v61
    %v64 = vsub.f32 0.0, %v62
    %v65 = vmul.f32 %v63, 1.442695
    %v66 = vpow.pop %v65
    %v67 = vmul.f32 %v64, 1.442695
    %v68 = vpow.pop %v67
    %v69 = vadd.f32 %v66, 1.0
    %v70 = vlog2.pop %v69
    %v71 = vmul.f32 %v70, 0.6931472
    %v72 = vmul.f32 -0.5, %v66
    %v73 = vadd.f32 %v72, 1.0
    %v74 = vmul.f32 %v73, %v66
    %v75 = vand.u32 2147483647, %v66
    %vm76 = vcmp.lt.f32.partialorder %v75, 0.0004427343
    %v77 = vsel %vm76, %v74, %v71
    %v78 = vadd.f32 %v68, 1.0
    %v79 = vlog2.pop %v78
    %v80 = vmul.f32 %v79, 0.6931472
    %v81 = vmul.f32 -0.5, %v68
    %v82 = vadd.f32 %v81, 1.0
    %v83 = vmul.f32 %v82, %v68
    %v84 = vand.u32 2147483647, %v68
    %vm85 = vcmp.lt.f32.partialorder %v84, 0.0004427343
    %v86 = vsel %vm85, %v83, %v80
    %v87 = vsub.f32 0.0, %v57
    %v88 = vsub.f32 0.0, %v58
    %v89 = vmax.f32 %v87, 0.0
    %v90 = vmax.f32 %v88, 0.0
    %v91 = vadd.f32 %v89, %v77
    %v92 = vadd.f32 %v90, %v86
    %v93 = vmin.f32 %v91, 100.0
    %v94 = vmin.f32 %v92, 100.0
    %v95 = vmax.f32 %v57, 0.0
    %v96 = vmax.f32 %v58, 0.0
    %v97 = vadd.f32 %v95, %v77
    %v98 = vadd.f32 %v96, %v86
    %v99 = vmin.f32 %v97, 100.0
    %v100 = vmin.f32 %v98, 100.0
    %v101 = vsub.f32 %v93, %v99
    %v102 = vsub.f32 %v94, %v100
    %v103 = vmul.f32 %v59, %v101
    %v104 = vmul.f32 %v60, %v102
    %v105 = vadd.f32 %v99, %v103
    %v106 = vadd.f32 %v100, %v104
    %v107 = vadd.f32 %v105, %v106
    %v108 = vld [vmem:[#allocation7] sm:$0xff]
    %v109 = vadd.f32 %v108, %v107
    %110 = vst [vmem:[#allocation7] sm:$0xff] %v109
    // Predicated region
    $region22: #{tpu_custom_call.1} parent=1 // pred_check
      _
    $region23: #{tpu_custom_call.1} parent=1 // pred_check_branch
      %112 = sbr.rel (0) target = $region25
    $region24: #{tpu_custom_call.1} parent=1 // pred_region
      %s114 = ssub.s32 128, 128
      %115 = vsyncadd [#allocation4], %s114
      %s117 = sshll.u32 [#allocation7], 4
      %s118 = int_to_ptr.vmem [resolvable:$true] %s117
      %120 = dma.vmem_to_hbm [thread:$0]  %s118, 128, %s2, [#allocation4]
    $region25: #{tpu_custom_call.1} parent=1 // pred_fallthru
      _
    // Predicated region
    $region26: #{tpu_custom_call.1} parent=1 // pred_check
      _
    $region27: #{tpu_custom_call.1} parent=1 // pred_check_branch
      %122 = sbr.rel (0) target = $region29
    $region28: #{tpu_custom_call.1} parent=1 // pred_region
      %123 = dma.done [#allocation4], 128
    $region29: #{tpu_custom_call.1} parent=1 // pred_fallthru
      _
    %124 = vsyncpa [#allocation3], 1
    %125 = vsyncpa [#allocation6], 1
    %126 = vsyncpa [#allocation4], 1

</llo_original>
